<compile_context>
chip_gen: v6e
topology: v6e:2x2x1
jax: 0.10.0
libtpu: 0.0.40
codegen_flags: <defaults>
</compile_context>

<pallas_src>
import functools

import jax
import jax.numpy as jnp
from jax.experimental import pallas as pl
from jax.experimental.pallas import tpu as pltpu


def _angle_ce_kernel(cos_ref, phit_ref, logits_ref, y_ref, out_ref, *,
                     n_total, tile_rows, factor, gamma, w_angle, w_ce):
    i = pl.program_id(0)

    # Native-dtype tiles -> f32 in-kernel (VPU cast hidden under the block DMA).
    cos = cos_ref[...].astype(jnp.float32)        # (TN, C)
    logits = logits_ref[...].astype(jnp.float32)  # (TN, C2)
    phi_t = phit_ref[...].astype(jnp.float32)     # (TN, 1)  pre-gathered phi[i, y_i]
    y = y_ref[...]                                # (TN, 1)  int32

    rows, c = cos.shape
    _, c2 = logits.shape

    col_ids = jax.lax.broadcasted_iota(jnp.int32, (rows, c), 1)
    tgt = col_ids == y                            # one-hot target mask (reused for CE)

    # ---------------- AngleLoss: patched logsumexp over cos --------------------------
    # output differs from cos only at the target column:
    #   out_t = cos_t + (phi_t - cos_t) * factor
    # so compute LSE stats on cos and patch the single target term instead of
    # materializing a full-width `output`.
    cos_t = jnp.sum(jnp.where(tgt, cos, 0.0), axis=1, keepdims=True)     # (TN, 1)
    out_t = cos_t + (phi_t - cos_t) * jnp.float32(factor)                # (TN, 1)

    # m >= max(output) (cos/phi are O(1) cosine-like values, so this shift is stable).
    m = jnp.maximum(jnp.max(cos, axis=1, keepdims=True), out_t)
    sum_exp = jnp.sum(jnp.exp(cos - m), axis=1, keepdims=True)
    sum_exp = sum_exp - jnp.exp(cos_t - m) + jnp.exp(out_t - m)
    logpt = (out_t - m) - jnp.log(sum_exp)                               # (TN, 1)

    if gamma == 0:
        focal = jnp.ones_like(logpt)                     # (1 - pt)**0 == 1
    else:
        pt = jnp.exp(logpt)
        # Clamp: pt can round slightly above 1 -> negative base with fractional pow = NaN.
        one_minus_pt = jnp.maximum(jnp.float32(1.0) - pt, jnp.float32(0.0))
        if float(gamma).is_integer():
            focal = one_minus_pt ** int(gamma)           # integer pow -> plain VPU multiplies
        else:
            focal = one_minus_pt ** jnp.float32(gamma)

    # ---------------- CrossEntropyLoss on the classification logits ------------------
    if c2 == c:
        tgt2 = tgt                                       # reuse mask (common case)
    else:
        col_ids2 = jax.lax.broadcasted_iota(jnp.int32, (rows, c2), 1)
        tgt2 = col_ids2 == y
    m2 = jnp.max(logits, axis=1, keepdims=True)
    sh2 = logits - m2
    lse2 = jnp.log(jnp.sum(jnp.exp(sh2), axis=1, keepdims=True))
    logp2 = jnp.sum(jnp.where(tgt2, sh2, 0.0), axis=1, keepdims=True) - lse2  # (TN, 1)

    # Fused weighted per-row loss: w0 * (-focal*logpt) + w1 * (-logp2)
    combined = -(jnp.float32(w_angle) * focal * logpt + jnp.float32(w_ce) * logp2)

    # Mask rows of a partial last tile (padded rows hold undefined data; where()
    # selects, so NaN/Inf in dead rows cannot leak into the sum).
    row_ids = jax.lax.broadcasted_iota(jnp.int32, (rows, 1), 0) + i * tile_rows
    combined = jnp.where(row_ids < n_total, combined, 0.0)
    tile_sum = jnp.sum(combined)

    # Per-tile partial sum written to a lane-dense (1, 8, 128) VMEM block; the batch
    # axis carries no cross-step state, so it can be scheduled "parallel" (v7x 2-TC).
    out_ref[...] = jnp.full(out_ref.shape, tile_sum, dtype=jnp.float32)


def _pick_tile_rows(n, c_max, in_itemsize):
    """Byte-targeted batch tile with a generation-aware VMEM budget."""
    try:
        vmem_cap = int(pltpu.get_tpu_info().vmem_capacity_bytes)   # 128 MiB v5e/v6e, 64 MiB v7x
    except Exception:
        vmem_cap = 64 * 1024 * 1024                                # conservative fallback
    # Scoped limit we request from Mosaic: ~3/4 of physical, capped at 96 MiB.
    vmem_limit = min((vmem_cap * 3) // 4, 96 * 1024 * 1024)
    # Budget for the two double-buffered full-width input streams plus ~6 live
    # full-width f32 temporaries; leave the rest as Mosaic scratch headroom.
    budget = int(vmem_limit * 0.7)
    bytes_per_row = 2 * 2 * c_max * in_itemsize + 6 * c_max * 4
    tn = budget // max(bytes_per_row, 1)
    tn -= tn % 8                      # sublane alignment
    tn = max(tn, 8)
    # TODO(synk): for SphereFace-scale class counts (C in the tens of thousands) even an
    # 8-row full-C strip can exceed the scoped limit on v7x; add a second grid axis over
    # C with an online (flash-style) logsumexp carrying (m, l, target_val) per row.
    if n <= tn:
        return n, vmem_limit          # block == full batch dim (always legal)
    return int(tn), vmem_limit


def angle_loss_with_ce(cos_theta, phi_theta, cls_logits, label, *,
                       lambda_min=5, lambda_max=1500, weight=(1.0, 1.0),
                       it=1, tile_rows=None):
    """Pallas TPU implementation of AngleLossWithCE.forward (iteration count `it`)."""
    n, c = cos_theta.shape
    assert phi_theta.shape == (n, c)
    n2, c2 = cls_logits.shape
    assert n2 == n
    assert label.shape[0] == n

    # Reproduce the PyTorch constructor quirk: AngleLoss(lambda_min, lambda_max) binds
    # positionally -> gamma = lambda_min, lambda_min = lambda_max, lambda_max = 1500.
    gamma = lambda_min
    eff_lambda_min = float(lambda_max)
    eff_lambda_max = 1500.0
    lamb = max(eff_lambda_min, eff_lambda_max / (1.0 + 0.1 * it))
    factor = 1.0 / (1.0 + lamb)

    itemsize = max(cos_theta.dtype.itemsize, cls_logits.dtype.itemsize)
    auto_tn, vmem_limit = _pick_tile_rows(n, max(c, c2), itemsize)
    tn = int(tile_rows) if tile_rows is not None else auto_tn
    assert tn == n or tn % 8 == 0, "tile_rows must equal N or be a multiple of 8"
    grid_n = pl.cdiv(n, tn)

    y2d = label.reshape(n, 1).astype(jnp.int32)
    # phi_theta is only ever read at the target column -> gather (N, 1) in the wrapper
    # instead of streaming the full (N, C) array through the kernel.
    phi_t = jnp.take_along_axis(phi_theta, y2d, axis=1)

    kernel = functools.partial(
        _angle_ce_kernel,
        n_total=n, tile_rows=tn, factor=factor, gamma=gamma,
        w_angle=float(weight[0]), w_ce=float(weight[1]))

    bytes_accessed = (n * c * cos_theta.dtype.itemsize
                      + n * c2 * cls_logits.dtype.itemsize
                      + n * (phi_t.dtype.itemsize + 4)
                      + grid_n * 8 * 128 * 4)
    cost = pl.CostEstimate(
        flops=int(8 * n * (c + c2)),
        transcendentals=int(n * (c + c2) + 6 * n),
        bytes_accessed=int(bytes_accessed))

    # TODO(synk): if profiling at large C on v5e/v6e still shows exposed DMA, bump the
    # two streamed BlockSpecs to pipeline_mode=pl.Buffered(3) (VMEM is plentiful there).
    partial_sums = pl.pallas_call(
        kernel,
        out_shape=jax.ShapeDtypeStruct((grid_n, 8, 128), jnp.float32),
        grid_spec=pltpu.PrefetchScalarGridSpec(
            num_scalar_prefetch=0,
            grid=(grid_n,),
            in_specs=[
                pl.BlockSpec((tn, c), lambda i: (i, 0)),    # cos_theta tile
                pl.BlockSpec((tn, 1), lambda i: (i, 0)),    # gathered phi[i, y_i]
                pl.BlockSpec((tn, c2), lambda i: (i, 0)),   # classification logits tile
                pl.BlockSpec((tn, 1), lambda i: (i, 0)),    # labels tile
            ],
            out_specs=pl.BlockSpec((1, 8, 128), lambda i: (i, 0, 0)),
        ),
        compiler_params=pltpu.CompilerParams(
            dimension_semantics=("parallel",),              # no cross-step state anymore
            vmem_limit_bytes=int(vmem_limit),
        ),
        cost_estimate=cost,
    )(cos_theta, phi_t, cls_logits, y2d)

    # Tiny wrapper-side reduction over grid_n partial sums + mean normalization.
    return jnp.sum(partial_sums[:, 0, 0]) / jnp.float32(n)


def _ref_angle_loss_with_ce(cos_theta, phi_theta, cls_logits, label, *,
                            lambda_min=5, lambda_max=1500, weight=(1.0, 1.0), it=1):
    """Pure-JAX reference (mirrors the PyTorch module, incl. constructor quirk)."""
    gamma = lambda_min
    lamb = max(float(lambda_max), 1500.0 / (1.0 + 0.1 * it))
    factor = 1.0 / (1.0 + lamb)

    cos = cos_theta.astype(jnp.float32)
    phi = phi_theta.astype(jnp.float32)
    logits = cls_logits.astype(jnp.float32)
    c = cos.shape[1]

    onehot = jax.nn.one_hot(label, c, dtype=jnp.float32)
    output = cos + onehot * (phi - cos) * factor
    logsm = jax.nn.log_softmax(output, axis=1)
    logpt = jnp.sum(logsm * onehot, axis=1)
    pt = jnp.exp(logpt)
    angle = jnp.mean(-((1.0 - pt) ** gamma) * logpt)

    onehot2 = jax.nn.one_hot(label, logits.shape[1], dtype=jnp.float32)
    logsm2 = jax.nn.log_softmax(logits, axis=1)
    ce = jnp.mean(-jnp.sum(logsm2 * onehot2, axis=1))

    return angle * weight[0] + ce * weight[1]


if __name__ == "__main__":
    key = jax.random.PRNGKey(0)
    k1, k2, k3, k4, k5, k6, k7, k8 = jax.random.split(key, 8)

    # --- test 1: small f32 problem, single tile -------------------------------------
    N, C = 8, 16
    cos_theta = jax.random.uniform(k1, (N, C), jnp.float32, minval=-1.0, maxval=1.0)
    phi_theta = jax.random.uniform(k2, (N, C), jnp.float32, minval=-2.0, maxval=1.0)
    cls_logits = jax.random.normal(k3, (N, C), jnp.float32)
    label = jax.random.randint(k4, (N,), 0, C, dtype=jnp.int32)

    loss = angle_loss_with_ce(cos_theta, phi_theta, cls_logits, label)
    loss = jax.block_until_ready(loss)
    ref = _ref_angle_loss_with_ce(cos_theta, phi_theta, cls_logits, label)
    assert jnp.allclose(loss, ref, rtol=1e-5, atol=1e-5), (loss, ref)

    # --- test 2: bf16 inputs, multi-step grid with a partial last tile ---------------
    N2, C2 = 20, 24
    cos2 = jax.random.uniform(k5, (N2, C2), jnp.float32, minval=-1.0, maxval=1.0).astype(jnp.bfloat16)
    phi2 = jax.random.uniform(k6, (N2, C2), jnp.float32, minval=-2.0, maxval=1.0).astype(jnp.bfloat16)
    logits2 = jax.random.normal(k7, (N2, C2), jnp.float32).astype(jnp.bfloat16)
    label2 = jax.random.randint(k8, (N2,), 0, C2, dtype=jnp.int32)

    loss2 = angle_loss_with_ce(cos2, phi2, logits2, label2,
                               weight=(0.7, 1.3), tile_rows=8)
    loss2 = jax.block_until_ready(loss2)
    ref2 = _ref_angle_loss_with_ce(cos2, phi2, logits2, label2, weight=(0.7, 1.3))
    assert jnp.allclose(loss2, ref2, rtol=1e-4, atol=1e-4), (loss2, ref2)

    print("KERNEL_OK")
</pallas_src>

<mosaic_0001>
module attributes {stable_mosaic.version = 11 : i64} {
  func.func @_angle_ce_kernel(%arg0: i32, %arg1: memref<8x16xf32, #tpu.memory_space<vmem>>, %arg2: memref<8x1xf32, #tpu.memory_space<vmem>>, %arg3: memref<8x16xf32, #tpu.memory_space<vmem>>, %arg4: memref<8x1xi32, #tpu.memory_space<vmem>>, %arg5: memref<1x8x128xf32, #tpu.memory_space<vmem>>) attributes {dimension_semantics = [#tpu.dimension_semantics<parallel>], iteration_bounds = array<i64: 1>, scalar_prefetch = 0 : i64, scratch_operands = 0 : i64, tpu.core_type = #tpu.core_type<tc>, window_params = [{transform_indices = @transform_0, window_bounds = array<i64: 8, 16>}, {transform_indices = @transform_1, window_bounds = array<i64: 8, 1>}, {transform_indices = @transform_2, window_bounds = array<i64: 8, 16>}, {transform_indices = @transform_3, window_bounds = array<i64: 8, 1>}, {transform_indices = @transform_4, window_bounds = array<i64: 1, 8, 128>}]} {
    %c0 = arith.constant 0 : index
    %c0_0 = arith.constant 0 : index
    %0 = vector.load %arg1[%c0, %c0_0] : memref<8x16xf32, #tpu.memory_space<vmem>>, vector<8x16xf32>
    %c0_1 = arith.constant 0 : index
    %c0_2 = arith.constant 0 : index
    %1 = vector.load %arg3[%c0_1, %c0_2] : memref<8x16xf32, #tpu.memory_space<vmem>>, vector<8x16xf32>
    %c0_3 = arith.constant 0 : index
    %c0_4 = arith.constant 0 : index
    %2 = vector.load %arg2[%c0_3, %c0_4] : memref<8x1xf32, #tpu.memory_space<vmem>>, vector<8x1xf32>
    %c0_5 = arith.constant 0 : index
    %c0_6 = arith.constant 0 : index
    %3 = vector.load %arg4[%c0_5, %c0_6] : memref<8x1xi32, #tpu.memory_space<vmem>>, vector<8x1xi32>
    %4 = tpu.iota {dimensions = array<i32: 1>} : vector<8x16xi32>
    %5 = vector.broadcast %3 : vector<8x1xi32> to vector<8x16xi32>
    %6 = arith.cmpi eq, %4, %5 : vector<8x16xi32>
    %cst = arith.constant 0.000000e+00 : f32
    %7 = vector.broadcast %cst : f32 to vector<8x16xf32>
    %8 = arith.select %6, %0, %7 : vector<8x16xi1>, vector<8x16xf32>
    %cst_7 = arith.constant dense<0.000000e+00> : vector<8xf32>
    %9 = vector.multi_reduction <add>, %8, %cst_7 [1] : vector<8x16xf32> to vector<8xf32>
    %10 = vector.shape_cast %9 : vector<8xf32> to vector<8x1xf32>
    %11 = arith.subf %2, %10 : vector<8x1xf32>
    %cst_8 = arith.constant 6.66222535E-4 : f32
    %12 = vector.broadcast %cst_8 : f32 to vector<8x1xf32>
    %13 = arith.mulf %11, %12 : vector<8x1xf32>
    %14 = arith.addf %10, %13 : vector<8x1xf32>
    %cst_9 = arith.constant dense<0xFF800000> : vector<8xf32>
    %15 = vector.multi_reduction <maximumf>, %0, %cst_9 [1] : vector<8x16xf32> to vector<8xf32>
    %16 = vector.shape_cast %15 : vector<8xf32> to vector<8x1xf32>
    %17 = arith.maximumf %16, %14 : vector<8x1xf32>
    %18 = vector.broadcast %17 : vector<8x1xf32> to vector<8x16xf32>
    %19 = arith.subf %0, %18 : vector<8x16xf32>
    %20 = math.exp %19 : vector<8x16xf32>
    %cst_10 = arith.constant dense<0.000000e+00> : vector<8xf32>
    %21 = vector.multi_reduction <add>, %20, %cst_10 [1] : vector<8x16xf32> to vector<8xf32>
    %22 = vector.shape_cast %21 : vector<8xf32> to vector<8x1xf32>
    %23 = arith.subf %10, %17 : vector<8x1xf32>
    %24 = math.exp %23 : vector<8x1xf32>
    %25 = arith.subf %22, %24 : vector<8x1xf32>
    %26 = arith.subf %14, %17 : vector<8x1xf32>
    %27 = math.exp %26 : vector<8x1xf32>
    %28 = arith.addf %25, %27 : vector<8x1xf32>
    %29 = arith.subf %14, %17 : vector<8x1xf32>
    %30 = math.log %28 : vector<8x1xf32>
    %31 = arith.subf %29, %30 : vector<8x1xf32>
    %32 = math.exp %31 : vector<8x1xf32>
    %cst_11 = arith.constant 1.000000e+00 : f32
    %33 = vector.broadcast %cst_11 : f32 to vector<8x1xf32>
    %34 = arith.subf %33, %32 : vector<8x1xf32>
    %cst_12 = arith.constant 0.000000e+00 : f32
    %35 = vector.broadcast %cst_12 : f32 to vector<8x1xf32>
    %36 = arith.maximumf %34, %35 : vector<8x1xf32>
    %37 = arith.mulf %36, %36 : vector<8x1xf32>
    %38 = arith.mulf %37, %37 : vector<8x1xf32>
    %39 = arith.mulf %36, %38 : vector<8x1xf32>
    %cst_13 = arith.constant dense<0xFF800000> : vector<8xf32>
    %40 = vector.multi_reduction <maximumf>, %1, %cst_13 [1] : vector<8x16xf32> to vector<8xf32>
    %41 = vector.shape_cast %40 : vector<8xf32> to vector<8x1xf32>
    %42 = vector.broadcast %41 : vector<8x1xf32> to vector<8x16xf32>
    %43 = arith.subf %1, %42 : vector<8x16xf32>
    %44 = math.exp %43 : vector<8x16xf32>
    %cst_14 = arith.constant dense<0.000000e+00> : vector<8xf32>
    %45 = vector.multi_reduction <add>, %44, %cst_14 [1] : vector<8x16xf32> to vector<8xf32>
    %46 = vector.shape_cast %45 : vector<8xf32> to vector<8x1xf32>
    %47 = math.log %46 : vector<8x1xf32>
    %cst_15 = arith.constant 0.000000e+00 : f32
    %48 = vector.broadcast %cst_15 : f32 to vector<8x16xf32>
    %49 = arith.select %6, %43, %48 : vector<8x16xi1>, vector<8x16xf32>
    %cst_16 = arith.constant dense<0.000000e+00> : vector<8xf32>
    %50 = vector.multi_reduction <add>, %49, %cst_16 [1] : vector<8x16xf32> to vector<8xf32>
    %51 = vector.shape_cast %50 : vector<8xf32> to vector<8x1xf32>
    %52 = arith.subf %51, %47 : vector<8x1xf32>
    %cst_17 = arith.constant 1.000000e+00 : f32
    %53 = vector.broadcast %cst_17 : f32 to vector<8x1xf32>
    %54 = arith.mulf %53, %39 : vector<8x1xf32>
    %55 = arith.mulf %54, %31 : vector<8x1xf32>
    %cst_18 = arith.constant 1.000000e+00 : f32
    %56 = vector.broadcast %cst_18 : f32 to vector<8x1xf32>
    %57 = arith.mulf %56, %52 : vector<8x1xf32>
    %58 = arith.addf %55, %57 : vector<8x1xf32>
    %cst_19 = arith.constant 0.000000e+00 : f32
    %59 = vector.broadcast %cst_19 : f32 to vector<8x1xf32>
    %60 = arith.subf %59, %58 : vector<8x1xf32>
    %61 = tpu.iota {dimensions = array<i32: 0>} : vector<8x1xi32>
    %c8_i32 = arith.constant 8 : i32
    %62 = arith.muli %arg0, %c8_i32 : i32
    %63 = vector.broadcast %62 : i32 to vector<8x1xi32>
    %64 = arith.addi %61, %63 : vector<8x1xi32>
    %c8_i32_20 = arith.constant 8 : i32
    %65 = vector.broadcast %c8_i32_20 : i32 to vector<8x1xi32>
    %66 = arith.cmpi slt, %64, %65 : vector<8x1xi32>
    %cst_21 = arith.constant 0.000000e+00 : f32
    %67 = vector.broadcast %cst_21 : f32 to vector<8x1xf32>
    %68 = arith.select %66, %60, %67 : vector<8x1xi1>, vector<8x1xf32>
    %69 = vector.shape_cast %68 : vector<8x1xf32> to vector<1x8x1xf32>
    %cst_22 = arith.constant dense<0.000000e+00> : vector<1xf32>
    %70 = vector.multi_reduction <add>, %69, %cst_22 [1, 2] : vector<1x8x1xf32> to vector<1xf32>
    %71 = vector.shape_cast %70 : vector<1xf32> to vector<1x1x1xf32>
    %72 = vector.extract %71[0, 0, 0] : f32 from vector<1x1x1xf32>
    %73 = vector.broadcast %72 : f32 to vector<1x8x128xf32>
    %c0_23 = arith.constant 0 : index
    %c0_24 = arith.constant 0 : index
    %c0_25 = arith.constant 0 : index
    %74 = vector.load %arg5[%c0_23, %c0_24, %c0_25] : memref<1x8x128xf32, #tpu.memory_space<vmem>>, vector<1x8x128xf32>
    tpu.vector_store %arg5[%c0_23, %c0_24, %c0_25], %73 {strides = array<i32>} : memref<1x8x128xf32, #tpu.memory_space<vmem>>, vector<1x8x128xf32>,
    return
  }
  func.func @transform_0(%arg0: i32) -> (i32, i32) {
    %c0_i32 = arith.constant 0 : i32
    %c0_i32_0 = arith.constant 0 : i32
    return %arg0, %c0_i32 : i32, i32
  }
  func.func @transform_1(%arg0: i32) -> (i32, i32) {
    %c0_i32 = arith.constant 0 : i32
    %c0_i32_0 = arith.constant 0 : i32
    return %arg0, %c0_i32 : i32, i32
  }
  func.func @transform_2(%arg0: i32) -> (i32, i32) {
    %c0_i32 = arith.constant 0 : i32
    %c0_i32_0 = arith.constant 0 : i32
    return %arg0, %c0_i32 : i32, i32
  }
  func.func @transform_3(%arg0: i32) -> (i32, i32) {
    %c0_i32 = arith.constant 0 : i32
    %c0_i32_0 = arith.constant 0 : i32
    return %arg0, %c0_i32 : i32, i32
  }
  func.func @transform_4(%arg0: i32) -> (i32, i32, i32) {
    %c0_i32 = arith.constant 0 : i32
    %c0_i32_0 = arith.constant 0 : i32
    %c0_i32_1 = arith.constant 0 : i32
    return %arg0, %c0_i32, %c0_i32_0 : i32, i32, i32
  }
}

</mosaic_0001>

<llo_original>
// kernel: tpu_custom_call.1
$region0: #{tpu_custom_call.1}
  #allocation0 [shape = 'u32[]', space=smem, size = 0x4, offset = 0x4, fixed_abs, tag = 'smem constant byte address 0x4 - core index']
  #allocation1 [shape = 'u32[144,128]{1,0:T(1,128)}', space=vmem, size = 0x12000, scoped, tag = 'internal scratch']
  %s0 = inlined_call_operand.vmem [shape: f32[8,16], index: 0, kind: input, shape index: {}]
  %s1 = inlined_call_operand.vmem [shape: f32[8,1], index: 1, kind: input, shape index: {}]
  %s2 = inlined_call_operand.vmem [shape: f32[8,16], index: 2, kind: input, shape index: {}]
  %s3 = inlined_call_operand.vmem [shape: s32[8,1], index: 3, kind: input, shape index: {}]
  %s4 = inlined_call_operand.hbm [shape: f32[1,8,128], index: 4, kind: output, shape index: {}]
  %s5 = sld [smem:[#allocation0]]
  $region26: #{tpu_custom_call.1} parent=0
    _
  %s7 = ssub.s32 1, %s5
  %s8 = scalar_select 0, %s7, %s5
  $region1: #{tpu_custom_call.1} parent=0
    #allocation2 [shape = 'u8[4096]{0}', space=vmem, size = 0x1000, scoped, tag = 'output window, operand 0, single buffered']
    #allocation3 [shape = 's32[1]{0}', space=sflag, size = 0x4, scoped, tag = 'scoped memory for tpu_custom_call.1']
    %9 = vsyncpa [#allocation3], 0
    // Predicated region
    $region2: #{tpu_custom_call.1} parent=1 // pred_check
      _
    $region3: #{tpu_custom_call.1} parent=1 // pred_check_branch
      %11 = sbr.rel (0) target = $region5
    $region4: #{tpu_custom_call.1} parent=1 // pred_region
      _
    $region5: #{tpu_custom_call.1} parent=1 // pred_fallthru
      _
    // Predicated region
    $region6: #{tpu_custom_call.1} parent=1 // pred_check
      _
    $region7: #{tpu_custom_call.1} parent=1 // pred_check_branch
      %13 = sbr.rel (0) target = $region9
    $region8: #{tpu_custom_call.1} parent=1 // pred_region
      _
    $region9: #{tpu_custom_call.1} parent=1 // pred_fallthru
      _
    // Predicated region
    $region10: #{tpu_custom_call.1} parent=1 // pred_check
      _
    $region11: #{tpu_custom_call.1} parent=1 // pred_check_branch
      %15 = sbr.rel (0) target = $region13
    $region12: #{tpu_custom_call.1} parent=1 // pred_region
      _
    $region13: #{tpu_custom_call.1} parent=1 // pred_fallthru
      _
    // Predicated region
    $region14: #{tpu_custom_call.1} parent=1 // pred_check
      _
    $region15: #{tpu_custom_call.1} parent=1 // pred_check_branch
      %17 = sbr.rel (0) target = $region17
    $region16: #{tpu_custom_call.1} parent=1 // pred_region
      _
    $region17: #{tpu_custom_call.1} parent=1 // pred_fallthru
      _
    %v18 = vld [vmem:[%s0] sm:$0xff]
    %v19 = vld [vmem:[%s2] sm:$0xff]
    %v20 = vld [vmem:[%s1] sm:$0xff]
    %v21 = vld [vmem:[%s3] sm:$0xff]
    %v22 = vlaneseq
    %v23 = vand.u32 %v22, 127
    %24 = vset.pattern.permute.xlu0 0
    %25 = vperm.xlu0 %24, %v21
    %v26 = vpop.permute.xlu0 %25
    %vm27 = vcmp.eq.s32.totalorder %v23, %v26
    %v28 = vsel %vm27, %v18, 0.0
    %vm29 = vcmask 130048
    %v30 = vsel %vm29, %v28, 0.0
    %31 = vadd.xlane.f32.xlu0 %v30
    %v32 = vpop.xlane.xlu0 %31
    %v33 = vsub.f32 %v20, %v32
    %v34 = vmul.f32 %v33, 0.00066622254
    %v35 = vadd.f32 %v32, %v34
    %v36 = vsel %vm29, %v18, -inf
    %37 = vmax.xlane.f32.xlu0 %v36
    %v38 = vpop.xlane.xlu0 %37
    %v39 = vmax.f32 %v38, %v35
    %41 = vset.pattern.permute.xlu0 0
    %42 = vperm.xlu0 %41, %v39
    %v43 = vpop.permute.xlu0 %42
    %v45 = vsub.f32 %v18, %v43
    %v46 = vmul.f32 %v45, 1.442695
    %v47 = vpow.pop %v46
    %v48 = vsel %vm29, %v47, 0.0
    %49 = vadd.xlane.f32.xlu0 %v48
    %v50 = vpop.xlane.xlu0 %49
    %v51 = vsub.f32 %v32, %v39
    %v52 = vmul.f32 %v51, 1.442695
    %v53 = vpow.pop %v52
    %v54 = vsub.f32 %v50, %v53
    %v55 = vsub.f32 %v35, %v39
    %v56 = vmul.f32 %v55, 1.442695
    %v57 = vpow.pop %v56
    %v58 = vadd.f32 %v54, %v57
    %v59 = vlog2.pop %v58
    %v60 = vmul.f32 %v59, 0.6931472
    %v61 = vsub.f32 %v55, %v60
    %v62 = vmul.f32 %v61, 1.442695
    %v63 = vpow.pop %v62
    %v64 = vsub.f32 1.0, %v63
    %v65 = vmax.f32 %v64, 0.0
    %v66 = vmul.f32 %v65, %v65
    %v67 = vmul.f32 %v66, %v66
    %v68 = vmul.f32 %v65, %v67
    %v69 = vsel %vm29, %v19, -inf
    %70 = vmax.xlane.f32.xlu0 %v69
    %v71 = vpop.xlane.xlu0 %70
    %v72 = vsub.f32 %v19, %v71
    %v73 = vmul.f32 %v72, 1.442695
    %v74 = vpow.pop %v73
    %v75 = vsel %vm29, %v74, 0.0
    %76 = vadd.xlane.f32.xlu0 %v75
    %v77 = vpop.xlane.xlu0 %76
    %v78 = vlog2.pop %v77
    %v79 = vmul.f32 %v78, 0.6931472
    %v80 = vsel %vm27, %v72, 0.0
    %v81 = vsel %vm29, %v80, 0.0
    %82 = vadd.xlane.f32.xlu0 %v81
    %v83 = vpop.xlane.xlu0 %82
    %v84 = vsub.f32 %v83, %v79
    %v85 = vmul.f32 %v68, %v61
    %v86 = vadd.f32 %v85, %v84
    %v87 = vsub.f32 0.0, %v86
    %v88 = vlaneseq
    %v89 = vshrl.u32 %v88, 7
    %s90 = smul.u32 0, 8
    %v91 = vstv %s90
    %v92 = vadd.s32 %v89, %v91
    %vm93 = vcmp.lt.s32.totalorder %v92, 8
    %v94 = vsel %vm93, %v87, 0.0
    %vm95 = vcmask 7168
    %v96 = vsel %vm95, %v94, 0.0
    %97 = vadd.xlane.f32.xlu0 %v96
    %v98 = vpop.xlane.xlu0 %97
    %v99 = vrot.slane %v98, 4
    %v100 = vadd.f32 %v98, %v99
    %v101 = vrot.slane %v100, 2
    %v102 = vadd.f32 %v100, %v101
    %v103 = vrot.slane %v102, 1
    %v104 = vadd.f32 %v102, %v103
    %s105 = vtos %v104
    %v106 = vstv %s105
    %107 = vst [vmem:[#allocation2] sm:$0xff] %v106
    // Predicated region
    $region18: #{tpu_custom_call.1} parent=1 // pred_check
      _
    $region19: #{tpu_custom_call.1} parent=1 // pred_check_branch
      %109 = sbr.rel (0) target = $region21
    $region20: #{tpu_custom_call.1} parent=1 // pred_region
      %s111 = ssub.s32 128, 128
      %112 = vsyncadd [#allocation3], %s111
      %s114 = sshll.u32 [#allocation2], 4
      %s115 = int_to_ptr.vmem [resolvable:$true] %s114
      %117 = dma.vmem_to_hbm [thread:$0]  %s115, 128, %s4, [#allocation3]
    $region21: #{tpu_custom_call.1} parent=1 // pred_fallthru
      _
    // Predicated region
    $region22: #{tpu_custom_call.1} parent=1 // pred_check
      _
    $region23: #{tpu_custom_call.1} parent=1 // pred_check_branch
      %119 = sbr.rel (0) target = $region25
    $region24: #{tpu_custom_call.1} parent=1 // pred_region
      %120 = dma.done [#allocation3], 128
    $region25: #{tpu_custom_call.1} parent=1 // pred_fallthru
      _
    %121 = vsyncpa [#allocation3], 1

</llo_original>
